<compile_context>
chip_gen: v5e
topology: v5e:2x2
jax: 0.10.0
libtpu: 0.0.40
codegen_flags: <defaults>
</compile_context>

<pallas_src>
import functools
import math

import numpy as np
import jax
import jax.numpy as jnp
from jax import lax
from jax.experimental import pallas as pl
from jax.experimental.pallas import tpu as pltpu


# ----------------------------------------------------------------------------
# Hardware introspection (best effort; safe fallbacks everywhere)
# ----------------------------------------------------------------------------
def _device_kind():
    try:
        return jax.devices()[0].device_kind.lower()
    except Exception:
        return ""


@functools.lru_cache(maxsize=None)
def _vmem_capacity_bytes():
    try:
        cap = int(pltpu.get_tpu_info().vmem_capacity_bytes)
        if cap > 0:
            return cap
    except Exception:
        pass
    return (64 << 20) if "v7" in _device_kind() else (128 << 20)


@functools.lru_cache(maxsize=None)
def _num_tensorcores():
    return 2 if "v7" in _device_kind() else 1


@functools.lru_cache(maxsize=None)
def _roll_is_forward():
    """True if pltpu.roll(x, s, ax) matches jnp.roll, i.e. out[k] = x[k - s]."""
    def probe(x_ref, o_ref):
        o_ref[...] = pltpu.roll(x_ref[...], 1, 1)
    try:
        x = jnp.broadcast_to(jnp.arange(128, dtype=jnp.float32), (8, 128))
        y = pl.pallas_call(
            probe, out_shape=jax.ShapeDtypeStruct((8, 128), jnp.float32))(x)
        return bool(jax.device_get(y)[0, 1] == 0.0)
    except Exception:
        return True


# ----------------------------------------------------------------------------
# Kernel factory.  Block layout: state (2, H, bb*W) with batch packed along the
# lane axis in width-W segments; scalar params (coef, beta, dt) live in SMEM.
# ----------------------------------------------------------------------------
def _make_kernel(mode, n_steps, W, use_force, roll_fwd):
    rk2 = (mode == 'rk2')

    def kernel(params_ref, u_ref, *rest):
        if use_force:
            f_ref, o_ref = rest
        else:
            (o_ref,) = rest
        coef = params_ref[0]
        beta = params_ref[1]
        dt = params_ref[2]

        _, H, L = u_ref.shape
        u = u_ref[0].astype(jnp.float32)
        v = u_ref[1].astype(jnp.float32)
        fu = f_ref[0].astype(jnp.float32) if use_force else None
        fv = f_ref[1].astype(jnp.float32) if use_force else None

        # Hoisted once and reused by every sub-step: segment-boundary masks.
        if W == L:
            is_first = is_last = None
        else:
            j = lax.broadcasted_iota(jnp.int32, (H, L), 1) % W
            is_first = j == 0
            is_last = j == W - 1

        def lap(x):
            # Periodic 5-point Laplacian.  H-wrap: full-extent sublane roll.
            ns = pltpu.roll(x, 1, 0) + pltpu.roll(x, H - 1, 0)
            if W == L:
                # One sample per block: W-wrap is a full-extent lane roll.
                ns = ns + pltpu.roll(x, 1, 1) + pltpu.roll(x, L - 1, 1)
            else:
                # Segmented W-wrap: samples are packed along lanes in width-W
                # segments; the periodic wrap must not cross segments.
                r_p1 = pltpu.roll(x, 1, 1)
                r_m1 = pltpu.roll(x, L - 1, 1)
                r_pW = pltpu.roll(x, W - 1, 1)
                r_mW = pltpu.roll(x, L - W + 1, 1)
                if roll_fwd:          # roll(x, s)[k] == x[k - s]
                    left = jnp.where(is_first, r_mW, r_p1)
                    right = jnp.where(is_last, r_pW, r_m1)
                else:                 # roll(x, s)[k] == x[k + s]
                    left = jnp.where(is_first, r_pW, r_m1)
                    right = jnp.where(is_last, r_mW, r_p1)
                ns = ns + left + right
            return ns - 4.0 * x

        def rhs(uu, vv):
            # ru = coef*Lap(u) + (1-A)u + beta*A*v
            # rv = coef*Lap(v) - beta*A*u + (1-A)v      with A = u^2 + v^2
            A = uu * uu + vv * vv
            Au = A * uu
            Av = A * vv
            ru = coef * lap(uu) + (uu - Au) + beta * Av
            rv = coef * lap(vv) + (vv - Av) - beta * Au
            if fu is not None:
                ru = ru + fu
                rv = rv + fv
            return ru, rv

        if mode == 'rhs':
            ru, rv = rhs(u, v)
            o_ref[0] = ru.astype(o_ref.dtype)
            o_ref[1] = rv.astype(o_ref.dtype)
            return

        def step(uu, vv):
            if rk2:
                ku1, kv1 = rhs(uu, vv)
                ku2, kv2 = rhs(uu + dt * ku1, vv + dt * kv1)
                return (uu + (0.5 * dt) * (ku1 + ku2),
                        vv + (0.5 * dt) * (kv1 + kv2))
            ku, kv = rhs(uu, vv)
            return uu + dt * ku, vv + dt * kv

        if n_steps <= 8:                     # short horizon: full unroll
            for _ in range(n_steps):
                u, v = step(u, v)
        else:                                # long horizon: rolled, unroll=2
            def body(_, uv):
                return step(*uv)
            try:
                u, v = lax.fori_loop(0, n_steps, body, (u, v), unroll=2)
            except TypeError:                # older jax without unroll kwarg
                u, v = lax.fori_loop(0, n_steps, body, (u, v))

        o_ref[0] = u.astype(o_ref.dtype)
        o_ref[1] = v.astype(o_ref.dtype)

    return kernel


# ----------------------------------------------------------------------------
# Tiling / packing / pallas_call wrapper
# ----------------------------------------------------------------------------
def _pick_bb(B, H, W, n_operands, budget_bytes, num_cores):
    """Samples per grid block: a divisor of B whose packed lane width (bb*W) is
    either the full extent or a multiple of 128, maximal under the VMEM budget
    (leaving >= num_cores blocks when the chip has 2 TensorCores)."""
    def footprint(bb):
        # (in + out [+ force]) blocks, each double-buffered by the pipeline
        return n_operands * 2 * (2 * H * bb * W * 4)

    cands = [d for d in range(1, B + 1)
             if B % d == 0 and (d == B or (d * W) % 128 == 0)]
    fit = [d for d in cands if footprint(d) <= budget_bytes]
    if not fit:
        return min(cands)        # smallest valid block; see halo-tiling TODO
    if num_cores >= 2:
        multi = [d for d in fit if B // d >= num_cores]
        if multi:
            return max(multi)
    return max(fit)


def _pack_state(u4):
    B, C, H, W = u4.shape
    return jnp.transpose(u4, (1, 2, 0, 3)).reshape(C, H, B * W)


def _unpack_state(y, B, H, W):
    C = y.shape[0]
    return jnp.transpose(y.reshape(C, H, B, W), (2, 0, 1, 3))


def _run(kernel, u_packed, params, bb, W, force_packed=None, force_shared=False):
    C, H, L = u_packed.shape
    Lb = bb * W
    nb = L // Lb
    state_blk = pl.BlockSpec((C, H, Lb), lambda g: (0, 0, g))
    in_specs = [pl.BlockSpec(memory_space=pltpu.MemorySpace.SMEM), state_blk]
    args = [params, u_packed]
    if force_packed is not None:
        if force_shared:
            # one small block, same index every grid step -> stays resident
            in_specs.append(pl.BlockSpec((C, H, Lb), lambda g: (0, 0, 0)))
        else:
            in_specs.append(state_blk)
        args.append(force_packed)
    vmem_cap = _vmem_capacity_bytes()
    return pl.pallas_call(
        kernel,
        out_shape=jax.ShapeDtypeStruct((C, H, L), u_packed.dtype),
        grid=(nb,),
        in_specs=in_specs,
        out_specs=state_blk,
        compiler_params=pltpu.CompilerParams(
            dimension_semantics=("parallel",),
            vmem_limit_bytes=int(0.75 * vmem_cap)),
    )(*args)


# ----------------------------------------------------------------------------
# RDTime2d: mirrors the PyTorch module (scalar params, no learned weights)
# ----------------------------------------------------------------------------
class RDTime2d:
    """2D reaction-diffusion with periodic BCs:
       du/dt = nu*Lap(u) + (1-A)u + beta*A*v
       dv/dt = nu*Lap(v) - beta*A*u + (1-A)v,   A = u^2 + v^2."""

    def __init__(self, max_dt, mesh_size, mesh_bound=((0, 0), (1, 1)),
                 viscosity=0.1, beta=1.0, timescheme='rk2', force=None):
        self.max_dt = float(max_dt)
        self.mesh_size = np.array(mesh_size).copy()
        self.mesh_bound = np.array(mesh_bound, dtype=np.float64).copy()
        dx0, dx1 = (self.mesh_bound[1] - self.mesh_bound[0]) / self.mesh_size
        assert abs(dx0 - dx1) < 1e-10
        self.dx = float(dx0)
        self.viscosity = float(viscosity)
        self.beta = float(beta)
        self._timescheme = timescheme
        self.force = force

    @property
    def timescheme(self):
        return self._timescheme

    # --- core entry: packs layout, picks tiling, runs one fused pallas_call --
    def _apply(self, u, mode, n_steps, dt, viscosity=None, beta=None, force=None):
        u = jnp.asarray(u)
        assert u.ndim >= 3 and u.shape[-3] == 2, "state must be (..., 2, H, W)"
        H, W = int(u.shape[-2]), int(u.shape[-1])
        lead = u.shape[:-3]
        B = int(np.prod(lead)) if lead else 1
        u4 = u.reshape(B, 2, H, W)

        viscosity = self.viscosity if viscosity is None else viscosity
        beta = self.beta if beta is None else beta
        if force is None:
            force = self.force

        use_force = force is not None
        f_shared = False
        f3 = f4 = None
        if use_force:
            f = jnp.asarray(force, dtype=u4.dtype)
            while f.ndim > 3 and f.shape[0] == 1:
                f = f[0]
            if f.ndim <= 3:                          # batch-independent forcing
                f3 = jnp.broadcast_to(f, (2, H, W))
                f_shared = True
            else:                                    # per-sample forcing
                f4 = jnp.broadcast_to(f, (B, 2, H, W))

        n_ops = 2 + (1 if use_force else 0)
        budget = int(0.6 * _vmem_capacity_bytes())
        bb = _pick_bb(B, H, W, n_ops, budget, _num_tensorcores())

        u_packed = _pack_state(u4)
        if use_force:
            f_packed = (jnp.tile(f3, (1, 1, bb)) if f_shared
                        else _pack_state(f4))
        else:
            f_packed = None

        coef = viscosity / self.dx ** 2
        params = jnp.asarray([coef, beta, dt], dtype=jnp.float32)

        kernel = _make_kernel(mode, int(n_steps), W, use_force,
                              _roll_is_forward())
        y = _run(kernel, u_packed, params, bb, W, f_packed, f_shared)
        return _unpack_state(y, B, H, W).reshape(u.shape)

    # --- public API (parity with the PyTorch module) -------------------------
    def RightHandItems(self, u, viscosity=None, beta=None, force=None, **kw):
        return self._apply(u, 'rhs', 1, 0.0, viscosity, beta, force)

    def euler(self, u, dt, viscosity=None, beta=None, force=None, **kw):
        return self._apply(u, 'euler', 1, dt, viscosity, beta, force)

    def rk2(self, u, dt, viscosity=None, beta=None, force=None, **kw):
        return self._apply(u, 'rk2', 1, dt, viscosity, beta, force)

    def predict(self, inputs, T, viscosity=None, beta=None, force=None, **kw):
        n = max(int(math.ceil(T / self.max_dt)), 1)
        dt = T / n
        # All n sub-steps are fused into ONE pallas_call; state stays on-chip.
        return self._apply(inputs, self._timescheme, n, dt, viscosity, beta, force)

    def forward(self, inputs, T, **kw):
        return self.predict(inputs, T, **kw)

    __call__ = forward


# ----------------------------------------------------------------------------
# Pure-JAX references (mirror the PyTorch module) for verification
# ----------------------------------------------------------------------------
def _rhs_reference(u, viscosity, beta, dx, force=None):
    A = u[..., :1, :, :] ** 2 + u[..., 1:, :, :] ** 2
    upad = jnp.pad(u, ((0, 0), (0, 0), (1, 1), (1, 1)), mode='wrap')
    rhi = viscosity / dx ** 2 * (upad[..., 2:, 1:-1] + upad[..., :-2, 1:-1]
                                 + upad[..., 1:-1, 2:] + upad[..., 1:-1, :-2]
                                 - 4.0 * upad[..., 1:-1, 1:-1])
    ru = rhi[..., :1, :, :] + (1 - A) * u[..., :1, :, :] + beta * A * u[..., 1:, :, :]
    rv = rhi[..., 1:, :, :] - (beta * A * u[..., :1, :, :] - (1 - A) * u[..., 1:, :, :])
    out = jnp.concatenate([ru, rv], axis=-3)
    if force is not None:
        out = out + force
    return out


def _predict_reference(u, T, max_dt, viscosity, beta, dx, timescheme='rk2'):
    n = max(int(math.ceil(T / max_dt)), 1)
    dt = T / n
    x = u
    for _ in range(n):
        if timescheme == 'rk2':
            k1 = _rhs_reference(x, viscosity, beta, dx)
            k2 = _rhs_reference(x + dt * k1, viscosity, beta, dx)
            x = x + dt / 2.0 * (k1 + k2)
        else:
            x = x + dt * _rhs_reference(x, viscosity, beta, dx)
    return x


if __name__ == "__main__":
    B, C, H, W = 2, 2, 16, 16           # PDE state has exactly 2 channels (u, v)
    key = jax.random.PRNGKey(0)
    kx, kf = jax.random.split(key)
    x = 0.5 * jax.random.normal(kx, (B, C, H, W), dtype=jnp.float32)
    f_shared = 0.1 * jax.random.normal(kf, (C, H, W), dtype=jnp.float32)

    # Stable explicit-integration regime: dx = 1/16, nu = 0.1 ->
    # |lambda_max| = 8*nu/dx^2 = 204.8, RK2 needs dt <= 2/204.8 ~ 9.8e-3.
    max_dt, T = 0.005, 0.02             # -> 4 fused RK2 sub-steps, dt = 0.005
    model = RDTime2d(max_dt=max_dt, mesh_size=(H, W),
                     mesh_bound=((0.0, 0.0), (1.0, 1.0)),
                     viscosity=0.1, beta=1.0, timescheme='rk2')

    # 1) Single RHS evaluation (with a batch-shared resident force) vs reference.
    rhs_k = jax.block_until_ready(model.RightHandItems(x, force=f_shared))
    rhs_r = _rhs_reference(x, model.viscosity, model.beta, model.dx,
                           force=f_shared[None])
    assert jnp.allclose(rhs_k, rhs_r, rtol=1e-4, atol=1e-5), \
        float(jnp.max(jnp.abs(rhs_k - rhs_r)))

    # 2) Fully fused time loop (4 RK2 steps inside ONE pallas_call) vs reference.
    out = jax.block_until_ready(model(x, T=T))
    out_ref = _predict_reference(x, T, max_dt, model.viscosity, model.beta,
                                 model.dx, model.timescheme)
    assert out.shape == (B, C, H, W)
    assert bool(jnp.all(jnp.isfinite(out)))
    assert jnp.allclose(out, out_ref, rtol=2e-4, atol=1e-5), \
        float(jnp.max(jnp.abs(out - out_ref)))

    print("KERNEL_OK")
</pallas_src>

<mosaic_0001>
module attributes {stable_mosaic.version = 11 : i64} {
  func.func @probe(%arg0: memref<8x128xf32, #tpu.memory_space<vmem>>, %arg1: memref<8x128xf32, #tpu.memory_space<vmem>>) attributes {dimension_semantics = [], scalar_prefetch = 0 : i64, scratch_operands = 0 : i64, tpu.core_type = #tpu.core_type<tc>} {
    %c0 = arith.constant 0 : index
    %c0_0 = arith.constant 0 : index
    %0 = vector.load %arg0[%c0, %c0_0] : memref<8x128xf32, #tpu.memory_space<vmem>>, vector<8x128xf32>
    %c1_i32 = arith.constant 1 : i32
    %1 = tpu.dynamic_rotate %0 by %c1_i32 dim 1 : vector<8x128xf32>, i32 -> vector<8x128xf32>
    %c0_1 = arith.constant 0 : index
    %c0_2 = arith.constant 0 : index
    %2 = vector.load %arg1[%c0_1, %c0_2] : memref<8x128xf32, #tpu.memory_space<vmem>>, vector<8x128xf32>
    tpu.vector_store %arg1[%c0_1, %c0_2], %1 {strides = array<i32>} : memref<8x128xf32, #tpu.memory_space<vmem>>, vector<8x128xf32>,
    return
  }
}

module attributes {stable_mosaic.version = 11 : i64} {
  func.func @kernel(%arg0: i32, %arg1: memref<3xf32, #tpu.memory_space<smem>>, %arg2: memref<2x16x32xf32, #tpu.memory_space<vmem>>, %arg3: memref<2x16x32xf32, #tpu.memory_space<vmem>>, %arg4: memref<2x16x32xf32, #tpu.memory_space<vmem>>) attributes {dimension_semantics = [#tpu.dimension_semantics<parallel>], iteration_bounds = array<i64: 1>, scalar_prefetch = 0 : i64, scratch_operands = 0 : i64, tpu.core_type = #tpu.core_type<tc>, window_params = [{transform_indices = @transform_0, window_bounds = array<i64: 3>}, {transform_indices = @transform_1, window_bounds = array<i64: 2, 16, 32>}, {pipeline_mode = #tpu.pipeline_mode<synchronous>, transform_indices = @transform_2, window_bounds = array<i64: 2, 16, 32>}, {transform_indices = @transform_3, window_bounds = array<i64: 2, 16, 32>}]} {
    %c0 = arith.constant 0 : index
    %0 = memref.load %arg1[%c0] : memref<3xf32, #tpu.memory_space<smem>>
    %c1 = arith.constant 1 : index
    %1 = memref.load %arg1[%c1] : memref<3xf32, #tpu.memory_space<smem>>
    %c0_0 = arith.constant 0 : index
    %c0_1 = arith.constant 0 : index
    %c0_2 = arith.constant 0 : index
    %2 = vector.load %arg2[%c0_0, %c0_1, %c0_2] : memref<2x16x32xf32, #tpu.memory_space<vmem>>, vector<1x16x32xf32>
    %3 = vector.shape_cast %2 : vector<1x16x32xf32> to vector<16x32xf32>
    %c1_3 = arith.constant 1 : index
    %c0_4 = arith.constant 0 : index
    %c0_5 = arith.constant 0 : index
    %4 = vector.load %arg2[%c1_3, %c0_4, %c0_5] : memref<2x16x32xf32, #tpu.memory_space<vmem>>, vector<1x16x32xf32>
    %5 = vector.shape_cast %4 : vector<1x16x32xf32> to vector<16x32xf32>
    %c0_6 = arith.constant 0 : index
    %c0_7 = arith.constant 0 : index
    %c0_8 = arith.constant 0 : index
    %6 = vector.load %arg3[%c0_6, %c0_7, %c0_8] : memref<2x16x32xf32, #tpu.memory_space<vmem>>, vector<1x16x32xf32>
    %7 = vector.shape_cast %6 : vector<1x16x32xf32> to vector<16x32xf32>
    %c1_9 = arith.constant 1 : index
    %c0_10 = arith.constant 0 : index
    %c0_11 = arith.constant 0 : index
    %8 = vector.load %arg3[%c1_9, %c0_10, %c0_11] : memref<2x16x32xf32, #tpu.memory_space<vmem>>, vector<1x16x32xf32>
    %9 = vector.shape_cast %8 : vector<1x16x32xf32> to vector<16x32xf32>
    %10 = tpu.iota {dimensions = array<i32: 1>} : vector<16x32xi32>
    %c16_i32 = arith.constant 16 : i32
    %c0_i32 = arith.constant 0 : i32
    %11 = arith.cmpi eq, %c16_i32, %c0_i32 : i32
    %c1_i32 = arith.constant 1 : i32
    %12 = arith.select %11, %c1_i32, %c16_i32 : i32
    %13 = vector.broadcast %12 : i32 to vector<16x32xi32>
    %14 = arith.remsi %10, %13 : vector<16x32xi32>
    %c0_i32_12 = arith.constant 0 : i32
    %15 = vector.broadcast %c0_i32_12 : i32 to vector<16x32xi32>
    %16 = arith.cmpi ne, %14, %15 : vector<16x32xi32>
    %c0_i32_13 = arith.constant 0 : i32
    %17 = vector.broadcast %c0_i32_13 : i32 to vector<16x32xi32>
    %18 = arith.cmpi slt, %14, %17 : vector<16x32xi32>
    %c0_i32_14 = arith.constant 0 : i32
    %19 = arith.cmpi slt, %12, %c0_i32_14 : i32
    %20 = vector.broadcast %19 : i1 to vector<16x32xi1>
    %21 = vector.broadcast %20 : vector<16x32xi1> to vector<16x32xi1>
    %22 = arith.xori %18, %21 : vector<16x32xi1>
    %23 = arith.andi %22, %16 : vector<16x32xi1>
    %24 = vector.broadcast %12 : i32 to vector<16x32xi32>
    %25 = arith.addi %14, %24 : vector<16x32xi32>
    %26 = arith.select %23, %25, %14 : vector<16x32xi1>, vector<16x32xi32>
    %c0_i32_15 = arith.constant 0 : i32
    %27 = vector.broadcast %c0_i32_15 : i32 to vector<16x32xi32>
    %28 = arith.cmpi eq, %26, %27 : vector<16x32xi32>
    %c15_i32 = arith.constant 15 : i32
    %29 = vector.broadcast %c15_i32 : i32 to vector<16x32xi32>
    %30 = arith.cmpi eq, %26, %29 : vector<16x32xi32>
    %31 = arith.mulf %3, %3 : vector<16x32xf32>
    %32 = arith.mulf %5, %5 : vector<16x32xf32>
    %33 = arith.addf %31, %32 : vector<16x32xf32>
    %34 = arith.mulf %33, %3 : vector<16x32xf32>
    %35 = arith.mulf %33, %5 : vector<16x32xf32>
    %c1_i32_16 = arith.constant 1 : i32
    %36 = tpu.dynamic_rotate %3 by %c1_i32_16 dim 0 : vector<16x32xf32>, i32 -> vector<16x32xf32>
    %c15_i32_17 = arith.constant 15 : i32
    %37 = tpu.dynamic_rotate %3 by %c15_i32_17 dim 0 : vector<16x32xf32>, i32 -> vector<16x32xf32>
    %38 = arith.addf %36, %37 : vector<16x32xf32>
    %c1_i32_18 = arith.constant 1 : i32
    %39 = tpu.dynamic_rotate %3 by %c1_i32_18 dim 1 : vector<16x32xf32>, i32 -> vector<16x32xf32>
    %c31_i32 = arith.constant 31 : i32
    %40 = tpu.dynamic_rotate %3 by %c31_i32 dim 1 : vector<16x32xf32>, i32 -> vector<16x32xf32>
    %c15_i32_19 = arith.constant 15 : i32
    %41 = tpu.dynamic_rotate %3 by %c15_i32_19 dim 1 : vector<16x32xf32>, i32 -> vector<16x32xf32>
    %c17_i32 = arith.constant 17 : i32
    %42 = tpu.dynamic_rotate %3 by %c17_i32 dim 1 : vector<16x32xf32>, i32 -> vector<16x32xf32>
    %43 = arith.select %28, %42, %39 : vector<16x32xi1>, vector<16x32xf32>
    %44 = arith.select %30, %41, %40 : vector<16x32xi1>, vector<16x32xf32>
    %45 = arith.addf %38, %43 : vector<16x32xf32>
    %46 = arith.addf %45, %44 : vector<16x32xf32>
    %cst = arith.constant 4.000000e+00 : f32
    %47 = vector.broadcast %cst : f32 to vector<16x32xf32>
    %48 = arith.mulf %47, %3 : vector<16x32xf32>
    %49 = arith.subf %46, %48 : vector<16x32xf32>
    %50 = vector.broadcast %0 : f32 to vector<16x32xf32>
    %51 = arith.mulf %50, %49 : vector<16x32xf32>
    %52 = arith.subf %3, %34 : vector<16x32xf32>
    %53 = arith.addf %51, %52 : vector<16x32xf32>
    %54 = vector.broadcast %1 : f32 to vector<16x32xf32>
    %55 = arith.mulf %54, %35 : vector<16x32xf32>
    %56 = arith.addf %53, %55 : vector<16x32xf32>
    %c1_i32_20 = arith.constant 1 : i32
    %57 = tpu.dynamic_rotate %5 by %c1_i32_20 dim 0 : vector<16x32xf32>, i32 -> vector<16x32xf32>
    %c15_i32_21 = arith.constant 15 : i32
    %58 = tpu.dynamic_rotate %5 by %c15_i32_21 dim 0 : vector<16x32xf32>, i32 -> vector<16x32xf32>
    %59 = arith.addf %57, %58 : vector<16x32xf32>
    %c1_i32_22 = arith.constant 1 : i32
    %60 = tpu.dynamic_rotate %5 by %c1_i32_22 dim 1 : vector<16x32xf32>, i32 -> vector<16x32xf32>
    %c31_i32_23 = arith.constant 31 : i32
    %61 = tpu.dynamic_rotate %5 by %c31_i32_23 dim 1 : vector<16x32xf32>, i32 -> vector<16x32xf32>
    %c15_i32_24 = arith.constant 15 : i32
    %62 = tpu.dynamic_rotate %5 by %c15_i32_24 dim 1 : vector<16x32xf32>, i32 -> vector<16x32xf32>
    %c17_i32_25 = arith.constant 17 : i32
    %63 = tpu.dynamic_rotate %5 by %c17_i32_25 dim 1 : vector<16x32xf32>, i32 -> vector<16x32xf32>
    %64 = arith.select %28, %63, %60 : vector<16x32xi1>, vector<16x32xf32>
    %65 = arith.select %30, %62, %61 : vector<16x32xi1>, vector<16x32xf32>
    %66 = arith.addf %59, %64 : vector<16x32xf32>
    %67 = arith.addf %66, %65 : vector<16x32xf32>
    %cst_26 = arith.constant 4.000000e+00 : f32
    %68 = vector.broadcast %cst_26 : f32 to vector<16x32xf32>
    %69 = arith.mulf %68, %5 : vector<16x32xf32>
    %70 = arith.subf %67, %69 : vector<16x32xf32>
    %71 = vector.broadcast %0 : f32 to vector<16x32xf32>
    %72 = arith.mulf %71, %70 : vector<16x32xf32>
    %73 = arith.subf %5, %35 : vector<16x32xf32>
    %74 = arith.addf %72, %73 : vector<16x32xf32>
    %75 = vector.broadcast %1 : f32 to vector<16x32xf32>
    %76 = arith.mulf %75, %34 : vector<16x32xf32>
    %77 = arith.subf %74, %76 : vector<16x32xf32>
    %78 = arith.addf %56, %7 : vector<16x32xf32>
    %79 = arith.addf %77, %9 : vector<16x32xf32>
    %c0_27 = arith.constant 0 : index
    %c0_28 = arith.constant 0 : index
    %c0_29 = arith.constant 0 : index
    %80 = vector.load %arg4[%c0_27, %c0_28, %c0_29] : memref<2x16x32xf32, #tpu.memory_space<vmem>>, vector<1x16x32xf32>
    %81 = vector.shape_cast %80 : vector<1x16x32xf32> to vector<16x32xf32>
    %82 = vector.shape_cast %78 : vector<16x32xf32> to vector<1x16x32xf32>
    tpu.vector_store %arg4[%c0_27, %c0_28, %c0_29], %82 {strides = array<i32>} : memref<2x16x32xf32, #tpu.memory_space<vmem>>, vector<1x16x32xf32>,
    %c1_30 = arith.constant 1 : index
    %c0_31 = arith.constant 0 : index
    %c0_32 = arith.constant 0 : index
    %83 = vector.load %arg4[%c1_30, %c0_31, %c0_32] : memref<2x16x32xf32, #tpu.memory_space<vmem>>, vector<1x16x32xf32>
    %84 = vector.shape_cast %83 : vector<1x16x32xf32> to vector<16x32xf32>
    %85 = vector.shape_cast %79 : vector<16x32xf32> to vector<1x16x32xf32>
    tpu.vector_store %arg4[%c1_30, %c0_31, %c0_32], %85 {strides = array<i32>} : memref<2x16x32xf32, #tpu.memory_space<vmem>>, vector<1x16x32xf32>,
    return
  }
  func.func @transform_0(%arg0: i32) -> i32 {
    %c0_i32 = arith.constant 0 : i32
    %c0_i32_0 = arith.constant 0 : i32
    return %c0_i32 : i32
  }
  func.func @transform_1(%arg0: i32) -> (i32, i32, i32) {
    %c0_i32 = arith.constant 0 : i32
    %c0_i32_0 = arith.constant 0 : i32
    %c0_i32_1 = arith.constant 0 : i32
    return %c0_i32, %c0_i32_0, %arg0 : i32, i32, i32
  }
  func.func @transform_2(%arg0: i32) -> (i32, i32, i32) {
    %c0_i32 = arith.constant 0 : i32
    %c0_i32_0 = arith.constant 0 : i32
    %c0_i32_1 = arith.constant 0 : i32
    %c0_i32_2 = arith.constant 0 : i32
    return %c0_i32, %c0_i32_0, %c0_i32_1 : i32, i32, i32
  }
  func.func @transform_3(%arg0: i32) -> (i32, i32, i32) {
    %c0_i32 = arith.constant 0 : i32
    %c0_i32_0 = arith.constant 0 : i32
    %c0_i32_1 = arith.constant 0 : i32
    return %c0_i32, %c0_i32_0, %arg0 : i32, i32, i32
  }
}

</mosaic_0001>

<llo_original>
// kernel: tpu_custom_call.1
$region0: #{tpu_custom_call.1}
  #allocation0 [shape = 'u32[]', space=smem, size = 0x4, offset = 0x4, fixed_abs, tag = 'smem constant byte address 0x4 - core index']
  #allocation1 [shape = 'u32[72,128]{1,0:T(1,128)}', space=vmem, size = 0x9000, scoped, tag = 'internal scratch']
  %s0 = inlined_call_operand.hbm [shape: f32[8,128], index: 0, kind: input, shape index: {}]
  %s1 = inlined_call_operand.hbm [shape: f32[8,128], index: 1, kind: output, shape index: {}]
  %s2 = sld [smem:[#allocation0]]
  $region18: #{tpu_custom_call.1} parent=0
    _
  %s4 = ssub.s32 1, %s2
  %s5 = scalar_select 0, %s4, %s2
  $region1: #{tpu_custom_call.1} parent=0
    #allocation2 [shape = 'u8[4096]{0}', space=vmem, size = 0x1000, scoped, tag = 'input window, operand 0, single buffered']
    #allocation3 [shape = 's32[1]{0}', space=sflag, size = 0x4, scoped, tag = 'scoped memory for tpu_custom_call.1']
    #allocation4 [shape = 's32[1]{0}', space=sflag, size = 0x4, scoped, tag = 'scoped memory for tpu_custom_call.1']
    #allocation5 [shape = 'u8[4096]{0}', space=vmem, size = 0x1000, scoped, tag = 'output window, operand 0, single buffered']
    %6 = vsyncpa [#allocation3], 0
    %7 = vsyncpa [#allocation4], 0
    // Predicated region
    $region2: #{tpu_custom_call.1} parent=1 // pred_check
      _
    $region3: #{tpu_custom_call.1} parent=1 // pred_check_branch
      %9 = sbr.rel (0) target = $region5
    $region4: #{tpu_custom_call.1} parent=1 // pred_region
      %11 = vsyncadd [#allocation3], 0
      %s13 = sshll.u32 %s0, 4
      %s14 = int_to_ptr.hbm [resolvable:$true] %s13
      %s15 = sshll.u32 [#allocation2], 4
      %s16 = int_to_ptr.vmem [resolvable:$true] %s15
      %18 = dma.hbm_to_vmem [thread:$0]  %s14, 128, %s16, [#allocation3]
    $region5: #{tpu_custom_call.1} parent=1 // pred_fallthru
      _
    // Predicated region
    $region6: #{tpu_custom_call.1} parent=1 // pred_check
      _
    $region7: #{tpu_custom_call.1} parent=1 // pred_check_branch
      %20 = sbr.rel (0) target = $region9
    $region8: #{tpu_custom_call.1} parent=1 // pred_region
      %22 = dma.done [#allocation3], 128
    $region9: #{tpu_custom_call.1} parent=1 // pred_fallthru
      _
    %v23 = vld [vmem:[#allocation2] sm:$0xff]
    %24 = vrot.lane.b32.xlu0 %v23, 1
    %v25 = vpop.permute.xlu0 %24
    %26 = vst [vmem:[#allocation5] sm:$0xff] %v25
    // Predicated region
    $region10: #{tpu_custom_call.1} parent=1 // pred_check
      _
    $region11: #{tpu_custom_call.1} parent=1 // pred_check_branch
      %28 = sbr.rel (0) target = $region13
    $region12: #{tpu_custom_call.1} parent=1 // pred_region
      %30 = vsyncadd [#allocation4], 0
      %s32 = sshll.u32 [#allocation5], 4
      %s33 = int_to_ptr.vmem [resolvable:$true] %s32
      %s34 = sshll.u32 %s1, 4
      %s35 = int_to_ptr.hbm [resolvable:$true] %s34
      %37 = dma.vmem_to_hbm [thread:$0]  %s33, 128, %s35, [#allocation4]
    $region13: #{tpu_custom_call.1} parent=1 // pred_fallthru
      _
    // Predicated region
    $region14: #{tpu_custom_call.1} parent=1 // pred_check
      _
    $region15: #{tpu_custom_call.1} parent=1 // pred_check_branch
      %39 = sbr.rel (0) target = $region17
    $region16: #{tpu_custom_call.1} parent=1 // pred_region
      %41 = dma.done [#allocation4], 128
    $region17: #{tpu_custom_call.1} parent=1 // pred_fallthru
      _
    %42 = vsyncpa [#allocation3], 1
    %43 = vsyncpa [#allocation4], 1

// kernel: tpu_custom_call.1
$region0: #{tpu_custom_call.1}
  #allocation0 [shape = 'u32[]', space=smem, size = 0x4, offset = 0x4, fixed_abs, tag = 'smem constant byte address 0x4 - core index']
  #allocation1 [shape = 'u32[72,128]{1,0:T(1,128)}', space=vmem, size = 0x9000, scoped, tag = 'internal scratch']
  %s0 = inlined_call_operand.hbm [shape: f32[3], index: 0, kind: input, shape index: {}]
  %s1 = inlined_call_operand.hbm [shape: f32[2,16,32], index: 1, kind: input, shape index: {}]
  %s2 = inlined_call_operand.hbm [shape: f32[2,16,32], index: 2, kind: input, shape index: {}]
  %s3 = inlined_call_operand.hbm [shape: f32[2,16,32], index: 3, kind: output, shape index: {}]
  %s4 = sld [smem:[#allocation0]]
  $region34: #{tpu_custom_call.1} parent=0
    _
  %s6 = ssub.s32 1, %s4
  %s7 = scalar_select 0, %s6, %s4
  $region1: #{tpu_custom_call.1} parent=0
    #allocation2 [shape = 'u8[512]{0}', space=smem, size = 0x200, scoped, tag = 'input window, operand 0, single buffered']
    #allocation3 [shape = 's32[1]{0}', space=sflag, size = 0x4, scoped, tag = 'scoped memory for tpu_custom_call.1']
    #allocation4 [shape = 's32[1]{0}', space=sflag, size = 0x4, scoped, tag = 'scoped memory for tpu_custom_call.1']
    #allocation5 [shape = 's32[1]{0}', space=sflag, size = 0x4, scoped, tag = 'scoped memory for tpu_custom_call.1']
    #allocation6 [shape = 'u8[16384]{0}', space=vmem, size = 0x4000, scoped, tag = 'input window, operand 1, single buffered']
    #allocation7 [shape = 'u8[16384]{0}', space=vmem, size = 0x4000, scoped, tag = 'input window, operand 2, single buffered']
    #allocation8 [shape = 's32[1]{0}', space=sflag, size = 0x4, scoped, tag = 'scoped memory for tpu_custom_call.1']
    #allocation9 [shape = 'u8[16384]{0}', space=vmem, size = 0x4000, scoped, tag = 'output window, operand 0, single buffered']
    %8 = vsyncpa [#allocation5], 0
    %9 = vsyncpa [#allocation3], 0
    %10 = vsyncpa [#allocation8], 0
    %11 = vsyncpa [#allocation4], 0
    // Predicated region
    $region2: #{tpu_custom_call.1} parent=1 // pred_check
      _
    $region3: #{tpu_custom_call.1} parent=1 // pred_check_branch
      %13 = sbr.rel (0) target = $region5
    $region4: #{tpu_custom_call.1} parent=1 // pred_region
      %15 = vsyncadd [#allocation5], 0
      %s17 = sshll.u32 %s0, 4
      %s18 = int_to_ptr.hbm [resolvable:$true] %s17
      %20 = dma.hbm_to_smem %s18, 16, [#allocation2], [#allocation5]
    $region5: #{tpu_custom_call.1} parent=1 // pred_fallthru
      _
    // Predicated region
    $region6: #{tpu_custom_call.1} parent=1 // pred_check
      _
    $region7: #{tpu_custom_call.1} parent=1 // pred_check_branch
      %22 = sbr.rel (0) target = $region9
    $region8: #{tpu_custom_call.1} parent=1 // pred_region
      %24 = vsyncadd [#allocation3], 0
      %s25 = sshll.u32 %s1, 4
      %s26 = int_to_ptr.hbm [resolvable:$true] %s25
      %s27 = sshll.u32 [#allocation6], 4
      %s28 = int_to_ptr.vmem [resolvable:$true] %s27
      %33 = dma.hbm_to_vmem [thread:$0]  %s26, 512, %s28, [#allocation3], 128, 128, 8
    $region9: #{tpu_custom_call.1} parent=1 // pred_fallthru
      _
    // Predicated region
    $region10: #{tpu_custom_call.1} parent=1 // pred_check
      _
    $region11: #{tpu_custom_call.1} parent=1 // pred_check_branch
      %35 = sbr.rel (0) target = $region13
    $region12: #{tpu_custom_call.1} parent=1 // pred_region
      %37 = vsyncadd [#allocation8], 0
      %s38 = sshll.u32 %s2, 4
      %s39 = int_to_ptr.hbm [resolvable:$true] %s38
      %s40 = sshll.u32 [#allocation7], 4
      %s41 = int_to_ptr.vmem [resolvable:$true] %s40
      %46 = dma.hbm_to_vmem [thread:$0]  %s39, 512, %s41, [#allocation8], 128, 128, 8
    $region13: #{tpu_custom_call.1} parent=1 // pred_fallthru
      _
    // Predicated region
    $region14: #{tpu_custom_call.1} parent=1 // pred_check
      _
    $region15: #{tpu_custom_call.1} parent=1 // pred_check_branch
      %48 = sbr.rel (0) target = $region17
    $region16: #{tpu_custom_call.1} parent=1 // pred_region
      %50 = dma.done [#allocation5], 16
    $region17: #{tpu_custom_call.1} parent=1 // pred_fallthru
      _
    // Predicated region
    $region18: #{tpu_custom_call.1} parent=1 // pred_check
      _
    $region19: #{tpu_custom_call.1} parent=1 // pred_check_branch
      %52 = sbr.rel (0) target = $region21
    $region20: #{tpu_custom_call.1} parent=1 // pred_region
      %54 = dma.done [#allocation3], 512
    $region21: #{tpu_custom_call.1} parent=1 // pred_fallthru
      _
    // Predicated region
    $region22: #{tpu_custom_call.1} parent=1 // pred_check
      _
    $region23: #{tpu_custom_call.1} parent=1 // pred_check_branch
      %56 = sbr.rel (0) target = $region25
    $region24: #{tpu_custom_call.1} parent=1 // pred_region
      %58 = dma.done [#allocation8], 512
    $region25: #{tpu_custom_call.1} parent=1 // pred_fallthru
      _
    %59 = sfence
    %s60 = sld [smem:[#allocation2]]
    %s61 = sld [smem:[#allocation2 + $0x1]]
    %v62 = vld [vmem:[#allocation6] sm:$0xff]
    %v63 = vld [vmem:[#allocation6 + $0x8] sm:$0xff]
    %s64 = scalar_lea.vmem [#allocation6], 16
    %v65 = vld [vmem:[%s64] sm:$0xff]
    %v66 = vld [vmem:[%s64 + $0x8] sm:$0xff]
    %v67 = vld [vmem:[#allocation7] sm:$0xff]
    %v68 = vld [vmem:[#allocation7 + $0x8] sm:$0xff]
    %s69 = scalar_lea.vmem [#allocation7], 16
    %v70 = vld [vmem:[%s69] sm:$0xff]
    %v71 = vld [vmem:[%s69 + $0x8] sm:$0xff]
    %v72 = vlaneseq
    %v73 = vand.u32 %v72, 127
    %vm74 = vcmp.lt.s32.totalorder %v73, 0
    %v75 = vsub.s32 0, %v73
    %v76 = vsel %vm74, %v75, %v73
    %v77 = vshrl.u32 %v76, 4
    %v78 = vand.u32 %v76, 15
    %v79 = vsub.s32 0, %v78
    %v80 = vsel %vm74, %v79, %v78
    %vm81 = vcmp.ne.s32.totalorder %v80, 0
    %vm82 = vcmp.lt.s32.totalorder %v80, 0
    %vm83 = vmand %vm82, %vm81
    %v84 = vadd.s32 %v80, 16
    %v85 = vsel %vm83, %v84, %v80
    %vm86 = vcmp.eq.s32.totalorder %v85, 0
    %vm87 = vcmp.eq.s32.totalorder %v85, 15
    %v88 = vmul.f32 %v62, %v62
    %v89 = vmul.f32 %v63, %v63
    %v90 = vmul.f32 %v65, %v65
    %v91 = vmul.f32 %v66, %v66
    %v92 = vadd.f32 %v88, %v90
    %v93 = vadd.f32 %v89, %v91
    %v94 = vmul.f32 %v92, %v62
    %v95 = vmul.f32 %v93, %v63
    %v96 = vmul.f32 %v92, %v65
    %v97 = vmul.f32 %v93, %v66
    %v98 = vrot.slane %v62, 7
    %v99 = vrot.slane %v63, 7
    %v100 = vlaneseq
    %v101 = vshrl.u32 %v100, 7
    %vm102 = vcmp.lt.s32.totalorder %v101, 1
    %v103 = vsel %vm102, %v98, %v99
    %v104 = vsel %vm102, %v99, %v98
    %v105 = vrot.slane %v62, 1
    %v106 = vrot.slane %v63, 1
    %vm107 = vcmp.lt.s32.totalorder %v101, 7
    %v108 = vsel %vm107, %v105, %v106
    %v109 = vsel %vm107, %v106, %v105
    %v110 = vadd.f32 %v104, %v108
    %v111 = vadd.f32 %v103, %v109
    %vm112 = vcmask 1047808
    %113 = vrot.lane.b32.xlu0 %v62, 32
    %v114 = vpop.permute.xlu0 %113
    %v115 = vsel %vm112, %v114, %v62
    %116 = vrot.lane.b32.xlu0 %v63, 32
    %v117 = vpop.permute.xlu0 %116
    %v118 = vsel %vm112, %v117, %v63
    %119 = vrot.lane.b32.xlu0 %v115, 32
    %v120 = vpop.permute.xlu0 %119
    %121 = vrot.lane.b32.xlu0 %v118, 32
    %v122 = vpop.permute.xlu0 %121
    %v123 = vsel %vm112, %v120, %v62
    %v124 = vsel %vm112, %v122, %v63
    %127 = vrot.lane.b32.xlu0 %v123, 113
    %v128 = vpop.permute.xlu0 %127
    %129 = vrot.lane.b32.xlu0 %v124, 113
    %v130 = vpop.permute.xlu0 %129
    %133 = vrot.lane.b32.xlu0 %v123, 97
    %v134 = vpop.permute.xlu0 %133
    %135 = vrot.lane.b32.xlu0 %v124, 97
    %v136 = vpop.permute.xlu0 %135
    %v139 = vsel %vm86, %v128, %v134
    %v140 = vsel %vm86, %v130, %v136
    %141 = vrot.lane.b32.xlu0 %v123, 111
    %v142 = vpop.permute.xlu0 %141
    %143 = vrot.lane.b32.xlu0 %v124, 111
    %v144 = vpop.permute.xlu0 %143
    %147 = vrot.lane.b32.xlu0 %v123, 127
    %v148 = vpop.permute.xlu0 %147
    %149 = vrot.lane.b32.xlu0 %v124, 127
    %v150 = vpop.permute.xlu0 %149
    %v153 = vsel %vm87, %v142, %v148
    %v154 = vsel %vm87, %v144, %v150
    %v155 = vadd.f32 %v110, %v139
    %v156 = vadd.f32 %v111, %v140
    %v157 = vadd.f32 %v155, %v153
    %v158 = vadd.f32 %v156, %v154
    %v159 = vmul.f32 %v62, 4.0
    %v160 = vmul.f32 %v63, 4.0
    %v161 = vsub.f32 %v157, %v159
    %v162 = vsub.f32 %v158, %v160
    %v163 = vstv %s60
    %v164 = vmul.f32 %v163, %v161
    %v165 = vmul.f32 %v163, %v162
    %v166 = vsub.f32 %v62, %v94
    %v167 = vsub.f32 %v63, %v95
    %v168 = vadd.f32 %v164, %v166
    %v169 = vadd.f32 %v165, %v167
    %v170 = vstv %s61
    %v171 = vmul.f32 %v170, %v96
    %v172 = vmul.f32 %v170, %v97
    %v173 = vadd.f32 %v168, %v171
    %v174 = vadd.f32 %v169, %v172
    %v175 = vrot.slane %v65, 7
    %v176 = vrot.slane %v66, 7
    %v177 = vsel %vm102, %v175, %v176
    %v178 = vsel %vm102, %v176, %v175
    %v179 = vrot.slane %v65, 1
    %v180 = vrot.slane %v66, 1
    %v181 = vsel %vm107, %v179, %v180
    %v182 = vsel %vm107, %v180, %v179
    %v183 = vadd.f32 %v178, %v181
    %v184 = vadd.f32 %v177, %v182
    %185 = vrot.lane.b32.xlu0 %v65, 32
    %v186 = vpop.permute.xlu0 %185
    %v187 = vsel %vm112, %v186, %v65
    %188 = vrot.lane.b32.xlu0 %v66, 32
    %v189 = vpop.permute.xlu0 %188
    %v190 = vsel %vm112, %v189, %v66
    %191 = vrot.lane.b32.xlu0 %v187, 32
    %v192 = vpop.permute.xlu0 %191
    %193 = vrot.lane.b32.xlu0 %v190, 32
    %v194 = vpop.permute.xlu0 %193
    %v195 = vsel %vm112, %v192, %v65
    %v196 = vsel %vm112, %v194, %v66
    %199 = vrot.lane.b32.xlu0 %v195, 113
    %v200 = vpop.permute.xlu0 %199
    %201 = vrot.lane.b32.xlu0 %v196, 113
    %v202 = vpop.permute.xlu0 %201
    %205 = vrot.lane.b32.xlu0 %v195, 97
    %v206 = vpop.permute.xlu0 %205
    %207 = vrot.lane.b32.xlu0 %v196, 97
    %v208 = vpop.permute.xlu0 %207
    %v211 = vsel %vm86, %v200, %v206
    %v212 = vsel %vm86, %v202, %v208
    %213 = vrot.lane.b32.xlu0 %v195, 111
    %v214 = vpop.permute.xlu0 %213
    %215 = vrot.lane.b32.xlu0 %v196, 111
    %v216 = vpop.permute.xlu0 %215
    %219 = vrot.lane.b32.xlu0 %v195, 127
    %v220 = vpop.permute.xlu0 %219
    %221 = vrot.lane.b32.xlu0 %v196, 127
    %v222 = vpop.permute.xlu0 %221
    %v225 = vsel %vm87, %v214, %v220
    %v226 = vsel %vm87, %v216, %v222
    %v227 = vadd.f32 %v183, %v211
    %v228 = vadd.f32 %v184, %v212
    %v229 = vadd.f32 %v227, %v225
    %v230 = vadd.f32 %v228, %v226
    %v231 = vmul.f32 %v65, 4.0
    %v232 = vmul.f32 %v66, 4.0
    %v233 = vsub.f32 %v229, %v231
    %v234 = vsub.f32 %v230, %v232
    %v235 = vmul.f32 %v163, %v233
    %v236 = vmul.f32 %v163, %v234
    %v237 = vsub.f32 %v65, %v96
    %v238 = vsub.f32 %v66, %v97
    %v239 = vadd.f32 %v235, %v237
    %v240 = vadd.f32 %v236, %v238
    %v241 = vmul.f32 %v170, %v94
    %v242 = vmul.f32 %v170, %v95
    %v243 = vsub.f32 %v239, %v241
    %v244 = vsub.f32 %v240, %v242
    %v245 = vadd.f32 %v173, %v67
    %v246 = vadd.f32 %v174, %v68
    %v247 = vadd.f32 %v243, %v70
    %v248 = vadd.f32 %v244, %v71
    %vm249 = vcmask 261120
    %250 = vst.msk [vmem:[#allocation9] sm:$0xff] %vm249, %v245
    %251 = vst.msk [vmem:[#allocation9 + $0x8] sm:$0xff] %vm249, %v246
    %s252 = scalar_lea.vmem [#allocation9], 16
    %253 = vst.msk [vmem:[%s252] sm:$0xff] %vm249, %v247
    %254 = vst.msk [vmem:[%s252 + $0x8] sm:$0xff] %vm249, %v248
    // Predicated region
    $region26: #{tpu_custom_call.1} parent=1 // pred_check
      _
    $region27: #{tpu_custom_call.1} parent=1 // pred_check_branch
      %256 = sbr.rel (0) target = $region29
    $region28: #{tpu_custom_call.1} parent=1 // pred_region
      %258 = vsyncadd [#allocation4], 0
      %s259 = sshll.u32 [#allocation9], 4
      %s260 = int_to_ptr.vmem [resolvable:$true] %s259
      %s261 = sshll.u32 %s3, 4
      %s262 = int_to_ptr.hbm [resolvable:$true] %s261
      %267 = dma.vmem_to_hbm [thread:$0]  %s260, 512, %s262, [#allocation4], 128, 128, 8
    $region29: #{tpu_custom_call.1} parent=1 // pred_fallthru
      _
    // Predicated region
    $region30: #{tpu_custom_call.1} parent=1 // pred_check
      _
    $region31: #{tpu_custom_call.1} parent=1 // pred_check_branch
      %269 = sbr.rel (0) target = $region33
    $region32: #{tpu_custom_call.1} parent=1 // pred_region
      %271 = dma.done [#allocation4], 512
    $region33: #{tpu_custom_call.1} parent=1 // pred_fallthru
      _
    %272 = vsyncpa [#allocation3], 1
    %273 = vsyncpa [#allocation8], 1
    %274 = vsyncpa [#allocation4], 1
    %275 = vsyncpa [#allocation5], 1

</llo_original>
